<compile_context>
chip_gen: v5e
topology: v5e:2x2
jax: 0.10.0
libtpu: 0.0.40
codegen_flags: <defaults>
</compile_context>

<pallas_src>
import jax
import jax.numpy as jnp
from jax import lax
from jax.experimental import pallas as pl
from jax.experimental.pallas import tpu as pltpu
import numpy as np


def _rotate_center_kernel(pos_ref, quat_ref, pos_out_ref, quat_out_ref):
    # pos_ref : (BT, 3, J, T)   component-major positions for one batch tile
    # quat_ref: (BT, 4, J, T)   component-major quaternions for one batch tile
    px = pos_ref[:, 0, :, :]   # (BT, J, T)
    py = pos_ref[:, 1, :, :]
    pz = pos_ref[:, 2, :, :]

    # dir_vec = p[joint 5] - p[joint 1]  -> (BT, 1, T)  (sublane-row reads, lane-dense)
    dir_x = px[:, 5:6, :] - px[:, 1:2, :]
    dir_z = pz[:, 5:6, :] - pz[:, 1:2, :]

    # ref_vector = cross(dir_vec, (0,1,0)) = (-dir_z, 0, dir_x)
    rx = -dir_z
    ry = jnp.zeros_like(dir_x)
    rz = dir_x

    # from_to_1_0_0: normalize v, q_raw = (1+vx, 0, vz, -vy), normalize quaternion (EUP rsqrt)
    inv_n = lax.rsqrt(rx * rx + ry * ry + rz * rz)
    vx = rx * inv_n
    vy = ry * inv_n
    vz = rz * inv_n
    qw = 1.0 + vx
    qx = jnp.zeros_like(qw)
    qy = vz
    qz = -vy
    inv_qn = lax.rsqrt(qw * qw + qx * qx + qy * qy + qz * qz)
    qw = qw * inv_qn           # (BT, 1, T); broadcasts over joint sublanes below
    qx = qx * inv_qn
    qy = qy * inv_qn
    qz = qz * inv_qn

    # ref_hip = mean over time (lane reduction) of joint-0 x/z, per batch element;
    # subtract from all x/z (y untouched).  Keep the batch axis out of the reduction.
    hip_x = jnp.mean(px[:, 0:1, :], axis=-1, keepdims=True)   # (BT, 1, 1)
    hip_z = jnp.mean(pz[:, 0:1, :], axis=-1, keepdims=True)
    px = px - hip_x
    pz = pz - hip_z

    # quaternion_apply(q, p) = (q * (0, p) * conj(q)).xyz
    tw = -qx * px - qy * py - qz * pz
    tx = qw * px + qy * pz - qz * py
    ty = qw * py - qx * pz + qz * px
    tz = qw * pz + qx * py - qy * px
    pos_out_ref[:, 0, :, :] = -tw * qx + tx * qw - ty * qz + tz * qy
    pos_out_ref[:, 1, :, :] = -tw * qy + tx * qz + ty * qw - tz * qx
    pos_out_ref[:, 2, :, :] = -tw * qz - tx * qy + ty * qx + tz * qw

    # quaternion_multiply(root_rot, quats): Hamilton product, root broadcast over joints
    bw = quat_ref[:, 0, :, :]
    bx = quat_ref[:, 1, :, :]
    by = quat_ref[:, 2, :, :]
    bz = quat_ref[:, 3, :, :]
    quat_out_ref[:, 0, :, :] = qw * bw - qx * bx - qy * by - qz * bz
    quat_out_ref[:, 1, :, :] = qw * bx + qx * bw + qy * bz - qz * by
    quat_out_ref[:, 2, :, :] = qw * by - qx * bz + qy * bw + qz * bx
    quat_out_ref[:, 3, :, :] = qw * bz + qx * by - qy * bx + qz * bw


def _choose_batch_tile(B, T, J, itemsize=4, target_bytes=4 << 20):
    """Pick how many batch elements to process per grid step.

    Targets ~target_bytes of padded VMEM payload per step (double-buffered by Pallas),
    keeps >= 2 grid steps when B allows (v7x megacore), and divides B exactly.
    """
    jp = -(-J // 8) * 8          # sublane padding
    tp = -(-T // 128) * 128      # lane padding
    per_b = (3 + 4) * 2 * jp * tp * itemsize   # inputs + outputs per batch element
    bt = max(1, min(B, target_bytes // per_b))
    if B >= 2:
        bt = min(bt, max(1, B // 2))           # keep at least 2 parallel grid steps
    while B % bt:
        bt -= 1
    return int(bt)


def batch_rotate_y_center_xz(global_positions, global_quats, ref_frame_id=None):
    """global_positions: (B, T, J, 3), global_quats: (B, T, J, 4) (w,x,y,z).

    ref_frame_id is accepted for interface parity but unused (as in the given forward)."""
    del ref_frame_id  # unused by this forward implementation
    B, T, J, _ = global_positions.shape

    # Layout glue: (B, T, J, C) -> (B, C, J, T)  (time on lanes, joints on sublanes).
    pos_cm = jnp.transpose(global_positions, (0, 3, 2, 1)).astype(jnp.float32)
    quat_cm = jnp.transpose(global_quats, (0, 3, 2, 1)).astype(jnp.float32)

    bt = _choose_batch_tile(B, T, J)
    grid = (B // bt,)

    pos_out, quat_out = pl.pallas_call(
        _rotate_center_kernel,
        out_shape=(
            jax.ShapeDtypeStruct((B, 3, J, T), jnp.float32),
            jax.ShapeDtypeStruct((B, 4, J, T), jnp.float32),
        ),
        grid=grid,
        in_specs=[
            pl.BlockSpec((bt, 3, J, T), lambda b: (b, 0, 0, 0)),
            pl.BlockSpec((bt, 4, J, T), lambda b: (b, 0, 0, 0)),
        ],
        out_specs=(
            pl.BlockSpec((bt, 3, J, T), lambda b: (b, 0, 0, 0)),
            pl.BlockSpec((bt, 4, J, T), lambda b: (b, 0, 0, 0)),
        ),
        compiler_params=pltpu.CompilerParams(
            dimension_semantics=("parallel",),
            vmem_limit_bytes=32 * 1024 * 1024,
        ),
    )(pos_cm, quat_cm)

    pos_out = jnp.transpose(pos_out, (0, 3, 2, 1))    # (B, T, J, 3)
    quat_out = jnp.transpose(quat_out, (0, 3, 2, 1))  # (B, T, J, 4)
    return pos_out, quat_out


def _reference(global_positions, global_quats):
    """Pure-JAX reference mirroring the PyTorch forward."""
    pos = global_positions.astype(jnp.float32)
    quats = global_quats.astype(jnp.float32)
    dir_vec = pos[..., 5:6, :] - pos[..., 1:2, :]                    # (B,T,1,3)
    up = jnp.array([0.0, 1.0, 0.0], dtype=pos.dtype)
    ref_vec = jnp.cross(dir_vec, up.reshape(1, 1, 1, 3))             # (B,T,1,3)
    # from_to_1_0_0
    v = ref_vec / jnp.linalg.norm(ref_vec, axis=-1, keepdims=True)
    qw = 1.0 + v[..., 0:1]
    qxyz = jnp.cross(v, jnp.array([1.0, 0.0, 0.0], dtype=pos.dtype).reshape(1, 1, 1, 3))
    q = jnp.concatenate([qw, qxyz], axis=-1)
    q = q / jnp.linalg.norm(q, axis=-1, keepdims=True)               # (B,T,1,4)
    # center x/z
    ref_hip = jnp.mean(pos[:, :, 0:1, :][..., jnp.array([0, 2])], axis=1, keepdims=True)
    pos = pos.at[..., jnp.array([0, 2])].add(-ref_hip)
    # quaternion_apply
    def qmul(a, b):
        aw, ax, ay, az = jnp.split(a, 4, -1)
        bw, bx, by, bz = jnp.split(b, 4, -1)
        return jnp.concatenate([
            aw * bw - ax * bx - ay * by - az * bz,
            aw * bx + ax * bw + ay * bz - az * by,
            aw * by - ax * bz + ay * bw + az * bx,
            aw * bz + ax * by - ay * bx + az * bw], -1)
    p_quat = jnp.concatenate([jnp.zeros_like(pos[..., :1]), pos], -1)
    conj = q * jnp.array([1.0, -1.0, -1.0, -1.0], dtype=q.dtype)
    pos_out = qmul(qmul(q, p_quat), conj)[..., 1:]
    quat_out = qmul(q, quats)
    return pos_out, quat_out


if __name__ == "__main__":
    key = jax.random.PRNGKey(0)
    B, T, J = 4, 16, 8   # J >= 6 required (uses joints 1 and 5)
    kp, kq = jax.random.split(key)
    global_positions = jax.random.normal(kp, (B, T, J, 3), dtype=jnp.float32)
    raw_q = jax.random.normal(kq, (B, T, J, 4), dtype=jnp.float32)
    global_quats = raw_q / jnp.linalg.norm(raw_q, axis=-1, keepdims=True)
    ref_frame_id = 0

    pos_out, quat_out = batch_rotate_y_center_xz(global_positions, global_quats, ref_frame_id)
    pos_out = jax.block_until_ready(pos_out)
    quat_out = jax.block_until_ready(quat_out)

    pos_ref, quat_ref = _reference(global_positions, global_quats)
    np.testing.assert_allclose(np.asarray(pos_out), np.asarray(pos_ref), rtol=1e-4, atol=2e-4)
    np.testing.assert_allclose(np.asarray(quat_out), np.asarray(quat_ref), rtol=1e-4, atol=2e-4)

    print("KERNEL_OK")
</pallas_src>

<mosaic_0001>
module attributes {stable_mosaic.version = 11 : i64} {
  func.func @_rotate_center_kernel(%arg0: i32, %arg1: memref<2x3x8x16xf32, #tpu.memory_space<vmem>>, %arg2: memref<2x4x8x16xf32, #tpu.memory_space<vmem>>, %arg3: memref<2x3x8x16xf32, #tpu.memory_space<vmem>>, %arg4: memref<2x4x8x16xf32, #tpu.memory_space<vmem>>) attributes {dimension_semantics = [#tpu.dimension_semantics<parallel>], iteration_bounds = array<i64: 2>, scalar_prefetch = 0 : i64, scratch_operands = 0 : i64, tpu.core_type = #tpu.core_type<tc>, window_params = [{transform_indices = @transform_0, window_bounds = array<i64: 2, 3, 8, 16>}, {transform_indices = @transform_1, window_bounds = array<i64: 2, 4, 8, 16>}, {transform_indices = @transform_2, window_bounds = array<i64: 2, 3, 8, 16>}, {transform_indices = @transform_3, window_bounds = array<i64: 2, 4, 8, 16>}]} {
    %c0 = arith.constant 0 : index
    %c0_0 = arith.constant 0 : index
    %c0_1 = arith.constant 0 : index
    %c0_2 = arith.constant 0 : index
    %0 = vector.load %arg1[%c0, %c0_0, %c0_1, %c0_2] : memref<2x3x8x16xf32, #tpu.memory_space<vmem>>, vector<2x1x8x16xf32>
    %1 = vector.shape_cast %0 : vector<2x1x8x16xf32> to vector<2x8x16xf32>
    %c0_3 = arith.constant 0 : index
    %c1 = arith.constant 1 : index
    %c0_4 = arith.constant 0 : index
    %c0_5 = arith.constant 0 : index
    %2 = vector.load %arg1[%c0_3, %c1, %c0_4, %c0_5] : memref<2x3x8x16xf32, #tpu.memory_space<vmem>>, vector<2x1x8x16xf32>
    %3 = vector.shape_cast %2 : vector<2x1x8x16xf32> to vector<2x8x16xf32>
    %c0_6 = arith.constant 0 : index
    %c2 = arith.constant 2 : index
    %c0_7 = arith.constant 0 : index
    %c0_8 = arith.constant 0 : index
    %4 = vector.load %arg1[%c0_6, %c2, %c0_7, %c0_8] : memref<2x3x8x16xf32, #tpu.memory_space<vmem>>, vector<2x1x8x16xf32>
    %5 = vector.shape_cast %4 : vector<2x1x8x16xf32> to vector<2x8x16xf32>
    %6 = vector.extract_strided_slice %1 {offsets = [0, 5, 0], sizes = [2, 1, 16], strides = [1, 1, 1]} : vector<2x8x16xf32> to vector<2x1x16xf32>
    %7 = vector.extract_strided_slice %1 {offsets = [0, 1, 0], sizes = [2, 1, 16], strides = [1, 1, 1]} : vector<2x8x16xf32> to vector<2x1x16xf32>
    %8 = arith.subf %6, %7 : vector<2x1x16xf32>
    %9 = vector.extract_strided_slice %5 {offsets = [0, 5, 0], sizes = [2, 1, 16], strides = [1, 1, 1]} : vector<2x8x16xf32> to vector<2x1x16xf32>
    %10 = vector.extract_strided_slice %5 {offsets = [0, 1, 0], sizes = [2, 1, 16], strides = [1, 1, 1]} : vector<2x8x16xf32> to vector<2x1x16xf32>
    %11 = arith.subf %9, %10 : vector<2x1x16xf32>
    %cst = arith.constant 0.000000e+00 : f32
    %12 = vector.broadcast %cst : f32 to vector<2x1x16xf32>
    %13 = arith.subf %12, %11 : vector<2x1x16xf32>
    %cst_9 = arith.constant 0.000000e+00 : f32
    %14 = vector.broadcast %cst_9 : f32 to vector<2x1x16xf32>
    %15 = arith.mulf %13, %13 : vector<2x1x16xf32>
    %16 = arith.mulf %14, %14 : vector<2x1x16xf32>
    %17 = arith.addf %15, %16 : vector<2x1x16xf32>
    %18 = arith.mulf %8, %8 : vector<2x1x16xf32>
    %19 = arith.addf %17, %18 : vector<2x1x16xf32>
    %20 = math.rsqrt %19 : vector<2x1x16xf32>
    %21 = arith.mulf %13, %20 : vector<2x1x16xf32>
    %22 = arith.mulf %14, %20 : vector<2x1x16xf32>
    %23 = arith.mulf %8, %20 : vector<2x1x16xf32>
    %cst_10 = arith.constant 1.000000e+00 : f32
    %24 = vector.broadcast %cst_10 : f32 to vector<2x1x16xf32>
    %25 = arith.addf %24, %21 : vector<2x1x16xf32>
    %cst_11 = arith.constant 0.000000e+00 : f32
    %26 = vector.broadcast %cst_11 : f32 to vector<2x1x16xf32>
    %cst_12 = arith.constant 0.000000e+00 : f32
    %27 = vector.broadcast %cst_12 : f32 to vector<2x1x16xf32>
    %28 = arith.subf %27, %22 : vector<2x1x16xf32>
    %29 = arith.mulf %25, %25 : vector<2x1x16xf32>
    %30 = arith.mulf %26, %26 : vector<2x1x16xf32>
    %31 = arith.addf %29, %30 : vector<2x1x16xf32>
    %32 = arith.mulf %23, %23 : vector<2x1x16xf32>
    %33 = arith.addf %31, %32 : vector<2x1x16xf32>
    %34 = arith.mulf %28, %28 : vector<2x1x16xf32>
    %35 = arith.addf %33, %34 : vector<2x1x16xf32>
    %36 = math.rsqrt %35 : vector<2x1x16xf32>
    %37 = arith.mulf %25, %36 : vector<2x1x16xf32>
    %38 = arith.mulf %26, %36 : vector<2x1x16xf32>
    %39 = arith.mulf %23, %36 : vector<2x1x16xf32>
    %40 = arith.mulf %28, %36 : vector<2x1x16xf32>
    %41 = vector.extract_strided_slice %1 {offsets = [0, 0, 0], sizes = [2, 1, 16], strides = [1, 1, 1]} : vector<2x8x16xf32> to vector<2x1x16xf32>
    %cst_13 = arith.constant dense<0.000000e+00> : vector<2x1xf32>
    %42 = vector.multi_reduction <add>, %41, %cst_13 [2] : vector<2x1x16xf32> to vector<2x1xf32>
    %43 = vector.shape_cast %42 : vector<2x1xf32> to vector<2x1x1xf32>
    %cst_14 = arith.constant 1.600000e+01 : f32
    %44 = vector.broadcast %cst_14 : f32 to vector<2x1x1xf32>
    %45 = arith.divf %43, %44 : vector<2x1x1xf32>
    %46 = vector.extract_strided_slice %5 {offsets = [0, 0, 0], sizes = [2, 1, 16], strides = [1, 1, 1]} : vector<2x8x16xf32> to vector<2x1x16xf32>
    %cst_15 = arith.constant dense<0.000000e+00> : vector<2x1xf32>
    %47 = vector.multi_reduction <add>, %46, %cst_15 [2] : vector<2x1x16xf32> to vector<2x1xf32>
    %48 = vector.shape_cast %47 : vector<2x1xf32> to vector<2x1x1xf32>
    %cst_16 = arith.constant 1.600000e+01 : f32
    %49 = vector.broadcast %cst_16 : f32 to vector<2x1x1xf32>
    %50 = arith.divf %48, %49 : vector<2x1x1xf32>
    %51 = vector.broadcast %45 : vector<2x1x1xf32> to vector<2x8x16xf32>
    %52 = arith.subf %1, %51 : vector<2x8x16xf32>
    %53 = vector.broadcast %50 : vector<2x1x1xf32> to vector<2x8x16xf32>
    %54 = arith.subf %5, %53 : vector<2x8x16xf32>
    %cst_17 = arith.constant 0.000000e+00 : f32
    %55 = vector.broadcast %cst_17 : f32 to vector<2x1x16xf32>
    %56 = arith.subf %55, %38 : vector<2x1x16xf32>
    %57 = vector.broadcast %56 : vector<2x1x16xf32> to vector<2x8x16xf32>
    %58 = arith.mulf %57, %52 : vector<2x8x16xf32>
    %59 = vector.broadcast %39 : vector<2x1x16xf32> to vector<2x8x16xf32>
    %60 = arith.mulf %59, %3 : vector<2x8x16xf32>
    %61 = arith.subf %58, %60 : vector<2x8x16xf32>
    %62 = vector.broadcast %40 : vector<2x1x16xf32> to vector<2x8x16xf32>
    %63 = arith.mulf %62, %54 : vector<2x8x16xf32>
    %64 = arith.subf %61, %63 : vector<2x8x16xf32>
    %65 = vector.broadcast %37 : vector<2x1x16xf32> to vector<2x8x16xf32>
    %66 = arith.mulf %65, %52 : vector<2x8x16xf32>
    %67 = vector.broadcast %39 : vector<2x1x16xf32> to vector<2x8x16xf32>
    %68 = arith.mulf %67, %54 : vector<2x8x16xf32>
    %69 = arith.addf %66, %68 : vector<2x8x16xf32>
    %70 = vector.broadcast %40 : vector<2x1x16xf32> to vector<2x8x16xf32>
    %71 = arith.mulf %70, %3 : vector<2x8x16xf32>
    %72 = arith.subf %69, %71 : vector<2x8x16xf32>
    %73 = vector.broadcast %37 : vector<2x1x16xf32> to vector<2x8x16xf32>
    %74 = arith.mulf %73, %3 : vector<2x8x16xf32>
    %75 = vector.broadcast %38 : vector<2x1x16xf32> to vector<2x8x16xf32>
    %76 = arith.mulf %75, %54 : vector<2x8x16xf32>
    %77 = arith.subf %74, %76 : vector<2x8x16xf32>
    %78 = vector.broadcast %40 : vector<2x1x16xf32> to vector<2x8x16xf32>
    %79 = arith.mulf %78, %52 : vector<2x8x16xf32>
    %80 = arith.addf %77, %79 : vector<2x8x16xf32>
    %81 = vector.broadcast %37 : vector<2x1x16xf32> to vector<2x8x16xf32>
    %82 = arith.mulf %81, %54 : vector<2x8x16xf32>
    %83 = vector.broadcast %38 : vector<2x1x16xf32> to vector<2x8x16xf32>
    %84 = arith.mulf %83, %3 : vector<2x8x16xf32>
    %85 = arith.addf %82, %84 : vector<2x8x16xf32>
    %86 = vector.broadcast %39 : vector<2x1x16xf32> to vector<2x8x16xf32>
    %87 = arith.mulf %86, %52 : vector<2x8x16xf32>
    %88 = arith.subf %85, %87 : vector<2x8x16xf32>
    %cst_18 = arith.constant 0.000000e+00 : f32
    %89 = vector.broadcast %cst_18 : f32 to vector<2x8x16xf32>
    %90 = arith.subf %89, %64 : vector<2x8x16xf32>
    %91 = vector.broadcast %38 : vector<2x1x16xf32> to vector<2x8x16xf32>
    %92 = arith.mulf %90, %91 : vector<2x8x16xf32>
    %93 = vector.broadcast %37 : vector<2x1x16xf32> to vector<2x8x16xf32>
    %94 = arith.mulf %72, %93 : vector<2x8x16xf32>
    %95 = arith.addf %92, %94 : vector<2x8x16xf32>
    %96 = vector.broadcast %40 : vector<2x1x16xf32> to vector<2x8x16xf32>
    %97 = arith.mulf %80, %96 : vector<2x8x16xf32>
    %98 = arith.subf %95, %97 : vector<2x8x16xf32>
    %99 = vector.broadcast %39 : vector<2x1x16xf32> to vector<2x8x16xf32>
    %100 = arith.mulf %88, %99 : vector<2x8x16xf32>
    %101 = arith.addf %98, %100 : vector<2x8x16xf32>
    %c0_19 = arith.constant 0 : index
    %c0_20 = arith.constant 0 : index
    %c0_21 = arith.constant 0 : index
    %c0_22 = arith.constant 0 : index
    %102 = vector.load %arg3[%c0_19, %c0_20, %c0_21, %c0_22] : memref<2x3x8x16xf32, #tpu.memory_space<vmem>>, vector<2x1x8x16xf32>
    %103 = vector.shape_cast %102 : vector<2x1x8x16xf32> to vector<2x8x16xf32>
    %104 = vector.shape_cast %101 : vector<2x8x16xf32> to vector<2x1x8x16xf32>
    tpu.vector_store %arg3[%c0_19, %c0_20, %c0_21, %c0_22], %104 {strides = array<i32>} : memref<2x3x8x16xf32, #tpu.memory_space<vmem>>, vector<2x1x8x16xf32>,
    %cst_23 = arith.constant 0.000000e+00 : f32
    %105 = vector.broadcast %cst_23 : f32 to vector<2x8x16xf32>
    %106 = arith.subf %105, %64 : vector<2x8x16xf32>
    %107 = vector.broadcast %39 : vector<2x1x16xf32> to vector<2x8x16xf32>
    %108 = arith.mulf %106, %107 : vector<2x8x16xf32>
    %109 = vector.broadcast %40 : vector<2x1x16xf32> to vector<2x8x16xf32>
    %110 = arith.mulf %72, %109 : vector<2x8x16xf32>
    %111 = arith.addf %108, %110 : vector<2x8x16xf32>
    %112 = vector.broadcast %37 : vector<2x1x16xf32> to vector<2x8x16xf32>
    %113 = arith.mulf %80, %112 : vector<2x8x16xf32>
    %114 = arith.addf %111, %113 : vector<2x8x16xf32>
    %115 = vector.broadcast %38 : vector<2x1x16xf32> to vector<2x8x16xf32>
    %116 = arith.mulf %88, %115 : vector<2x8x16xf32>
    %117 = arith.subf %114, %116 : vector<2x8x16xf32>
    %c0_24 = arith.constant 0 : index
    %c1_25 = arith.constant 1 : index
    %c0_26 = arith.constant 0 : index
    %c0_27 = arith.constant 0 : index
    %118 = vector.load %arg3[%c0_24, %c1_25, %c0_26, %c0_27] : memref<2x3x8x16xf32, #tpu.memory_space<vmem>>, vector<2x1x8x16xf32>
    %119 = vector.shape_cast %118 : vector<2x1x8x16xf32> to vector<2x8x16xf32>
    %120 = vector.shape_cast %117 : vector<2x8x16xf32> to vector<2x1x8x16xf32>
    tpu.vector_store %arg3[%c0_24, %c1_25, %c0_26, %c0_27], %120 {strides = array<i32>} : memref<2x3x8x16xf32, #tpu.memory_space<vmem>>, vector<2x1x8x16xf32>,
    %cst_28 = arith.constant 0.000000e+00 : f32
    %121 = vector.broadcast %cst_28 : f32 to vector<2x8x16xf32>
    %122 = arith.subf %121, %64 : vector<2x8x16xf32>
    %123 = vector.broadcast %40 : vector<2x1x16xf32> to vector<2x8x16xf32>
    %124 = arith.mulf %122, %123 : vector<2x8x16xf32>
    %125 = vector.broadcast %39 : vector<2x1x16xf32> to vector<2x8x16xf32>
    %126 = arith.mulf %72, %125 : vector<2x8x16xf32>
    %127 = arith.subf %124, %126 : vector<2x8x16xf32>
    %128 = vector.broadcast %38 : vector<2x1x16xf32> to vector<2x8x16xf32>
    %129 = arith.mulf %80, %128 : vector<2x8x16xf32>
    %130 = arith.addf %127, %129 : vector<2x8x16xf32>
    %131 = vector.broadcast %37 : vector<2x1x16xf32> to vector<2x8x16xf32>
    %132 = arith.mulf %88, %131 : vector<2x8x16xf32>
    %133 = arith.addf %130, %132 : vector<2x8x16xf32>
    %c0_29 = arith.constant 0 : index
    %c2_30 = arith.constant 2 : index
    %c0_31 = arith.constant 0 : index
    %c0_32 = arith.constant 0 : index
    %134 = vector.load %arg3[%c0_29, %c2_30, %c0_31, %c0_32] : memref<2x3x8x16xf32, #tpu.memory_space<vmem>>, vector<2x1x8x16xf32>
    %135 = vector.shape_cast %134 : vector<2x1x8x16xf32> to vector<2x8x16xf32>
    %136 = vector.shape_cast %133 : vector<2x8x16xf32> to vector<2x1x8x16xf32>
    tpu.vector_store %arg3[%c0_29, %c2_30, %c0_31, %c0_32], %136 {strides = array<i32>} : memref<2x3x8x16xf32, #tpu.memory_space<vmem>>, vector<2x1x8x16xf32>,
    %c0_33 = arith.constant 0 : index
    %c0_34 = arith.constant 0 : index
    %c0_35 = arith.constant 0 : index
    %c0_36 = arith.constant 0 : index
    %137 = vector.load %arg2[%c0_33, %c0_34, %c0_35, %c0_36] : memref<2x4x8x16xf32, #tpu.memory_space<vmem>>, vector<2x1x8x16xf32>
    %138 = vector.shape_cast %137 : vector<2x1x8x16xf32> to vector<2x8x16xf32>
    %c0_37 = arith.constant 0 : index
    %c1_38 = arith.constant 1 : index
    %c0_39 = arith.constant 0 : index
    %c0_40 = arith.constant 0 : index
    %139 = vector.load %arg2[%c0_37, %c1_38, %c0_39, %c0_40] : memref<2x4x8x16xf32, #tpu.memory_space<vmem>>, vector<2x1x8x16xf32>
    %140 = vector.shape_cast %139 : vector<2x1x8x16xf32> to vector<2x8x16xf32>
    %c0_41 = arith.constant 0 : index
    %c2_42 = arith.constant 2 : index
    %c0_43 = arith.constant 0 : index
    %c0_44 = arith.constant 0 : index
    %141 = vector.load %arg2[%c0_41, %c2_42, %c0_43, %c0_44] : memref<2x4x8x16xf32, #tpu.memory_space<vmem>>, vector<2x1x8x16xf32>
    %142 = vector.shape_cast %141 : vector<2x1x8x16xf32> to vector<2x8x16xf32>
    %c0_45 = arith.constant 0 : index
    %c3 = arith.constant 3 : index
    %c0_46 = arith.constant 0 : index
    %c0_47 = arith.constant 0 : index
    %143 = vector.load %arg2[%c0_45, %c3, %c0_46, %c0_47] : memref<2x4x8x16xf32, #tpu.memory_space<vmem>>, vector<2x1x8x16xf32>
    %144 = vector.shape_cast %143 : vector<2x1x8x16xf32> to vector<2x8x16xf32>
    %145 = vector.broadcast %37 : vector<2x1x16xf32> to vector<2x8x16xf32>
    %146 = arith.mulf %145, %138 : vector<2x8x16xf32>
    %147 = vector.broadcast %38 : vector<2x1x16xf32> to vector<2x8x16xf32>
    %148 = arith.mulf %147, %140 : vector<2x8x16xf32>
    %149 = arith.subf %146, %148 : vector<2x8x16xf32>
    %150 = vector.broadcast %39 : vector<2x1x16xf32> to vector<2x8x16xf32>
    %151 = arith.mulf %150, %142 : vector<2x8x16xf32>
    %152 = arith.subf %149, %151 : vector<2x8x16xf32>
    %153 = vector.broadcast %40 : vector<2x1x16xf32> to vector<2x8x16xf32>
    %154 = arith.mulf %153, %144 : vector<2x8x16xf32>
    %155 = arith.subf %152, %154 : vector<2x8x16xf32>
    %c0_48 = arith.constant 0 : index
    %c0_49 = arith.constant 0 : index
    %c0_50 = arith.constant 0 : index
    %c0_51 = arith.constant 0 : index
    %156 = vector.load %arg4[%c0_48, %c0_49, %c0_50, %c0_51] : memref<2x4x8x16xf32, #tpu.memory_space<vmem>>, vector<2x1x8x16xf32>
    %157 = vector.shape_cast %156 : vector<2x1x8x16xf32> to vector<2x8x16xf32>
    %158 = vector.shape_cast %155 : vector<2x8x16xf32> to vector<2x1x8x16xf32>
    tpu.vector_store %arg4[%c0_48, %c0_49, %c0_50, %c0_51], %158 {strides = array<i32>} : memref<2x4x8x16xf32, #tpu.memory_space<vmem>>, vector<2x1x8x16xf32>,
    %159 = vector.broadcast %37 : vector<2x1x16xf32> to vector<2x8x16xf32>
    %160 = arith.mulf %159, %140 : vector<2x8x16xf32>
    %161 = vector.broadcast %38 : vector<2x1x16xf32> to vector<2x8x16xf32>
    %162 = arith.mulf %161, %138 : vector<2x8x16xf32>
    %163 = arith.addf %160, %162 : vector<2x8x16xf32>
    %164 = vector.broadcast %39 : vector<2x1x16xf32> to vector<2x8x16xf32>
    %165 = arith.mulf %164, %144 : vector<2x8x16xf32>
    %166 = arith.addf %163, %165 : vector<2x8x16xf32>
    %167 = vector.broadcast %40 : vector<2x1x16xf32> to vector<2x8x16xf32>
    %168 = arith.mulf %167, %142 : vector<2x8x16xf32>
    %169 = arith.subf %166, %168 : vector<2x8x16xf32>
    %c0_52 = arith.constant 0 : index
    %c1_53 = arith.constant 1 : index
    %c0_54 = arith.constant 0 : index
    %c0_55 = arith.constant 0 : index
    %170 = vector.load %arg4[%c0_52, %c1_53, %c0_54, %c0_55] : memref<2x4x8x16xf32, #tpu.memory_space<vmem>>, vector<2x1x8x16xf32>
    %171 = vector.shape_cast %170 : vector<2x1x8x16xf32> to vector<2x8x16xf32>
    %172 = vector.shape_cast %169 : vector<2x8x16xf32> to vector<2x1x8x16xf32>
    tpu.vector_store %arg4[%c0_52, %c1_53, %c0_54, %c0_55], %172 {strides = array<i32>} : memref<2x4x8x16xf32, #tpu.memory_space<vmem>>, vector<2x1x8x16xf32>,
    %173 = vector.broadcast %37 : vector<2x1x16xf32> to vector<2x8x16xf32>
    %174 = arith.mulf %173, %142 : vector<2x8x16xf32>
    %175 = vector.broadcast %38 : vector<2x1x16xf32> to vector<2x8x16xf32>
    %176 = arith.mulf %175, %144 : vector<2x8x16xf32>
    %177 = arith.subf %174, %176 : vector<2x8x16xf32>
    %178 = vector.broadcast %39 : vector<2x1x16xf32> to vector<2x8x16xf32>
    %179 = arith.mulf %178, %138 : vector<2x8x16xf32>
    %180 = arith.addf %177, %179 : vector<2x8x16xf32>
    %181 = vector.broadcast %40 : vector<2x1x16xf32> to vector<2x8x16xf32>
    %182 = arith.mulf %181, %140 : vector<2x8x16xf32>
    %183 = arith.addf %180, %182 : vector<2x8x16xf32>
    %c0_56 = arith.constant 0 : index
    %c2_57 = arith.constant 2 : index
    %c0_58 = arith.constant 0 : index
    %c0_59 = arith.constant 0 : index
    %184 = vector.load %arg4[%c0_56, %c2_57, %c0_58, %c0_59] : memref<2x4x8x16xf32, #tpu.memory_space<vmem>>, vector<2x1x8x16xf32>
    %185 = vector.shape_cast %184 : vector<2x1x8x16xf32> to vector<2x8x16xf32>
    %186 = vector.shape_cast %183 : vector<2x8x16xf32> to vector<2x1x8x16xf32>
    tpu.vector_store %arg4[%c0_56, %c2_57, %c0_58, %c0_59], %186 {strides = array<i32>} : memref<2x4x8x16xf32, #tpu.memory_space<vmem>>, vector<2x1x8x16xf32>,
    %187 = vector.broadcast %37 : vector<2x1x16xf32> to vector<2x8x16xf32>
    %188 = arith.mulf %187, %144 : vector<2x8x16xf32>
    %189 = vector.broadcast %38 : vector<2x1x16xf32> to vector<2x8x16xf32>
    %190 = arith.mulf %189, %142 : vector<2x8x16xf32>
    %191 = arith.addf %188, %190 : vector<2x8x16xf32>
    %192 = vector.broadcast %39 : vector<2x1x16xf32> to vector<2x8x16xf32>
    %193 = arith.mulf %192, %140 : vector<2x8x16xf32>
    %194 = arith.subf %191, %193 : vector<2x8x16xf32>
    %195 = vector.broadcast %40 : vector<2x1x16xf32> to vector<2x8x16xf32>
    %196 = arith.mulf %195, %138 : vector<2x8x16xf32>
    %197 = arith.addf %194, %196 : vector<2x8x16xf32>
    %c0_60 = arith.constant 0 : index
    %c3_61 = arith.constant 3 : index
    %c0_62 = arith.constant 0 : index
    %c0_63 = arith.constant 0 : index
    %198 = vector.load %arg4[%c0_60, %c3_61, %c0_62, %c0_63] : memref<2x4x8x16xf32, #tpu.memory_space<vmem>>, vector<2x1x8x16xf32>
    %199 = vector.shape_cast %198 : vector<2x1x8x16xf32> to vector<2x8x16xf32>
    %200 = vector.shape_cast %197 : vector<2x8x16xf32> to vector<2x1x8x16xf32>
    tpu.vector_store %arg4[%c0_60, %c3_61, %c0_62, %c0_63], %200 {strides = array<i32>} : memref<2x4x8x16xf32, #tpu.memory_space<vmem>>, vector<2x1x8x16xf32>,
    return
  }
  func.func @transform_0(%arg0: i32) -> (i32, i32, i32, i32) {
    %c0_i32 = arith.constant 0 : i32
    %c0_i32_0 = arith.constant 0 : i32
    %c0_i32_1 = arith.constant 0 : i32
    %c0_i32_2 = arith.constant 0 : i32
    return %arg0, %c0_i32, %c0_i32_0, %c0_i32_1 : i32, i32, i32, i32
  }
  func.func @transform_1(%arg0: i32) -> (i32, i32, i32, i32) {
    %c0_i32 = arith.constant 0 : i32
    %c0_i32_0 = arith.constant 0 : i32
    %c0_i32_1 = arith.constant 0 : i32
    %c0_i32_2 = arith.constant 0 : i32
    return %arg0, %c0_i32, %c0_i32_0, %c0_i32_1 : i32, i32, i32, i32
  }
  func.func @transform_2(%arg0: i32) -> (i32, i32, i32, i32) {
    %c0_i32 = arith.constant 0 : i32
    %c0_i32_0 = arith.constant 0 : i32
    %c0_i32_1 = arith.constant 0 : i32
    %c0_i32_2 = arith.constant 0 : i32
    return %arg0, %c0_i32, %c0_i32_0, %c0_i32_1 : i32, i32, i32, i32
  }
  func.func @transform_3(%arg0: i32) -> (i32, i32, i32, i32) {
    %c0_i32 = arith.constant 0 : i32
    %c0_i32_0 = arith.constant 0 : i32
    %c0_i32_1 = arith.constant 0 : i32
    %c0_i32_2 = arith.constant 0 : i32
    return %arg0, %c0_i32, %c0_i32_0, %c0_i32_1 : i32, i32, i32, i32
  }
}

</mosaic_0001>

<llo_original>
// kernel: tpu_custom_call.1
$region0: #{tpu_custom_call.1}
  #allocation0 [shape = 'u32[]', space=smem, size = 0x4, offset = 0x4, fixed_abs, tag = 'smem constant byte address 0x4 - core index']
  #allocation1 [shape = 'u32[72,128]{1,0:T(1,128)}', space=vmem, size = 0x9000, scoped, tag = 'internal scratch']
  %s0 = inlined_call_operand.hbm [shape: f32[4,3,8,16], index: 0, kind: input, shape index: {}]
  %s1 = inlined_call_operand.hbm [shape: f32[4,4,8,16], index: 1, kind: input, shape index: {}]
  %s2 = inlined_call_operand.hbm [shape: f32[4,3,8,16], index: 2, kind: output, shape index: {0}]
  %s3 = inlined_call_operand.hbm [shape: f32[4,4,8,16], index: 3, kind: output, shape index: {1}]
  %4 = xla_tuple %s2, %s3
  %s5 = sld [smem:[#allocation0]]
  $region57: #{tpu_custom_call.1} parent=0
    _
  %s7 = ssub.s32 1, %s5
  %s8 = scalar_select 0, %s7, %s5
  $region1: #{tpu_custom_call.1} parent=0
    #allocation2 [shape = 'u8[49152]{0}', space=vmem, size = 0xc000, scoped, tag = 'input window, operand 0']
    #allocation3 [shape = 's32[2]{0}', space=sflag, size = 0x8, scoped, tag = 'scoped memory for tpu_custom_call.1']
    #allocation4 [shape = 's32[2]{0}', space=sflag, size = 0x8, scoped, tag = 'scoped memory for tpu_custom_call.1']
    #allocation5 [shape = 'u8[65536]{0}', space=vmem, size = 0x10000, scoped, tag = 'input window, operand 1']
    #allocation6 [shape = 's32[2]{0}', space=sflag, size = 0x8, scoped, tag = 'scoped memory for tpu_custom_call.1']
    #allocation7 [shape = 'u8[49152]{0}', space=vmem, size = 0xc000, scoped, tag = 'output window, operand 0']
    #allocation8 [shape = 'u8[65536]{0}', space=vmem, size = 0x10000, scoped, tag = 'output window, operand 1']
    #allocation9 [shape = 's32[2]{0}', space=sflag, size = 0x8, scoped, tag = 'scoped memory for tpu_custom_call.1']
    %9 = vsyncpa [#allocation3], 0
    %s10 = scalar_lea.sflag [#allocation3], 1
    %11 = vsyncpa %s10, 0
    %12 = vsyncpa [#allocation6], 0
    %s13 = scalar_lea.sflag [#allocation6], 1
    %14 = vsyncpa %s13, 0
    %15 = vsyncpa [#allocation4], 0
    %s16 = scalar_lea.sflag [#allocation4], 1
    %17 = vsyncpa %s16, 0
    %18 = vsyncpa [#allocation9], 0
    %s19 = scalar_lea.sflag [#allocation9], 1
    %20 = vsyncpa %s19, 0
    loop: start=0, step=1, limit=4
    $region2: #{tpu_custom_call.1} parent=1 // loop_pre_header
      _
    $region3: #{tpu_custom_call.1} parent=1 // loop_header
      %s22 = sphi 0, %s26
      %p23 = scmp.ge.s32.totalorder %s22, 4
      %s32 = sphi 0, %s34
      %s35 = sphi 0, %s32
      %s36 = sphi 0, %s35
      %s52 = sphi 0, %s36
      %s58 = sphi 0, %s60
      %s61 = sphi 0, %s58
      %s62 = sphi 0, %s61
      %s78 = sphi 0, %s62
      %s84 = sphi 0, %s86
      %s87 = sphi 0, %s84
      %s88 = sphi 0, %s87
      %s104 = sphi 0, %s88
      %s110 = sphi 0, %s112
      %s113 = sphi 0, %s110
      %s114 = sphi 0, %s113
      %s130 = sphi 0, %s114
    $region4: #{tpu_custom_call.1} parent=1 // loop_header_branch
      %25 = sbr.rel (%p23) target = $region8
    $region5: #{tpu_custom_call.1} parent=1 // loop_body
      %s27 = ssub.s32 %s22, 1
      %s28 = ssub.s32 %s22, 2
      %s29 = sadd.s32 %s22, 1
      %s30 = ssub.s32 %s22, %s29
      %p31 = scmp.eq.s32.totalorder %s30, 0
      %s33 = sadd.s32 %s32, 1
      %s34 = scalar_select %p31, %s32, %s33
      %p37 = pneg %p31
      %p38 = scmp.eq.s32.totalorder %s22, 1
      %p39 = por %p37, %p38
      %p40 = scmp.ne.s32.totalorder %s32, %s35
      %p41 = scmp.eq.s32.totalorder %s22, 0
      %p42 = por %p40, %p41
      %p43 = scmp.ne.s32.totalorder %s32, %s35
      %p44 = scmp.eq.s32.totalorder %s27, 1
      %p45 = por %p43, %p44
      %p46 = scmp.ne.s32.totalorder %s35, %s36
      %p47 = scmp.eq.s32.totalorder %s27, 0
      %p48 = por %p46, %p47
      %p49 = scmp.ne.s32.totalorder %s35, %s36
      %p50 = scmp.eq.s32.totalorder %s28, 1
      %p51 = por %p49, %p50
      %p53 = scmp.ne.s32.totalorder %s36, %s52
      %p54 = scmp.eq.s32.totalorder %s28, 0
      %p55 = por %p53, %p54
      %s56 = ssub.s32 %s22, %s29
      %p57 = scmp.eq.s32.totalorder %s56, 0
      %s59 = sadd.s32 %s58, 1
      %s60 = scalar_select %p57, %s58, %s59
      %p63 = pneg %p57
      %p64 = scmp.eq.s32.totalorder %s22, 1
      %p65 = por %p63, %p64
      %p66 = scmp.ne.s32.totalorder %s58, %s61
      %p67 = scmp.eq.s32.totalorder %s22, 0
      %p68 = por %p66, %p67
      %p69 = scmp.ne.s32.totalorder %s58, %s61
      %p70 = scmp.eq.s32.totalorder %s27, 1
      %p71 = por %p69, %p70
      %p72 = scmp.ne.s32.totalorder %s61, %s62
      %p73 = scmp.eq.s32.totalorder %s27, 0
      %p74 = por %p72, %p73
      %p75 = scmp.ne.s32.totalorder %s61, %s62
      %p76 = scmp.eq.s32.totalorder %s28, 1
      %p77 = por %p75, %p76
      %p79 = scmp.ne.s32.totalorder %s62, %s78
      %p80 = scmp.eq.s32.totalorder %s28, 0
      %p81 = por %p79, %p80
      %s82 = ssub.s32 %s22, %s29
      %p83 = scmp.eq.s32.totalorder %s82, 0
      %s85 = sadd.s32 %s84, 1
      %s86 = scalar_select %p83, %s84, %s85
      %p89 = pneg %p83
      %p90 = scmp.eq.s32.totalorder %s22, 1
      %p91 = por %p89, %p90
      %p92 = scmp.ne.s32.totalorder %s84, %s87
      %p93 = scmp.eq.s32.totalorder %s22, 0
      %p94 = por %p92, %p93
      %p95 = scmp.ne.s32.totalorder %s84, %s87
      %p96 = scmp.eq.s32.totalorder %s27, 1
      %p97 = por %p95, %p96
      %p98 = scmp.ne.s32.totalorder %s87, %s88
      %p99 = scmp.eq.s32.totalorder %s27, 0
      %p100 = por %p98, %p99
      %p101 = scmp.ne.s32.totalorder %s87, %s88
      %p102 = scmp.eq.s32.totalorder %s28, 1
      %p103 = por %p101, %p102
      %p105 = scmp.ne.s32.totalorder %s88, %s104
      %p106 = scmp.eq.s32.totalorder %s28, 0
      %p107 = por %p105, %p106
      %s108 = ssub.s32 %s22, %s29
      %p109 = scmp.eq.s32.totalorder %s108, 0
      %s111 = sadd.s32 %s110, 1
      %s112 = scalar_select %p109, %s110, %s111
      %p115 = pneg %p109
      %p116 = scmp.eq.s32.totalorder %s22, 1
      %p117 = por %p115, %p116
      %p118 = scmp.ne.s32.totalorder %s110, %s113
      %p119 = scmp.eq.s32.totalorder %s22, 0
      %p120 = por %p118, %p119
      %p121 = scmp.ne.s32.totalorder %s110, %s113
      %p122 = scmp.eq.s32.totalorder %s27, 1
      %p123 = por %p121, %p122
      %p124 = scmp.ne.s32.totalorder %s113, %s114
      %p125 = scmp.eq.s32.totalorder %s27, 0
      %p126 = por %p124, %p125
      %p127 = scmp.ne.s32.totalorder %s113, %s114
      %p128 = scmp.eq.s32.totalorder %s28, 1
      %p129 = por %p127, %p128
      %p131 = scmp.ne.s32.totalorder %s114, %s130
      %p132 = scmp.eq.s32.totalorder %s28, 0
      %p133 = por %p131, %p132
      %p134 = scmp.le.s32.totalorder 1, %s22
      %p135 = scmp.lt.s32.totalorder %s22, 3
      %p136 = pnand %p134, %p135
      %p137 = pneg %p136
      // Predicated region
      $region9: #{tpu_custom_call.1} parent=5 // pred_check
        _
      $region10: #{tpu_custom_call.1} parent=5 // pred_check_branch
        %139 = sbr.rel (%p136) target = $region12
      $region11: #{tpu_custom_call.1} parent=5 // pred_region
        %s140 = ssub.s32 %s22, 1
      $region12: #{tpu_custom_call.1} parent=5 // pred_fallthru
        _
      %p141 = scmp.lt.s32.totalorder %s22, 2
      // Predicated region
      $region13: #{tpu_custom_call.1} parent=5 // pred_check
        %p142 = pneg %p141
      $region14: #{tpu_custom_call.1} parent=5 // pred_check_branch
        %144 = sbr.rel (%p142) target = $region16
      $region15: #{tpu_custom_call.1} parent=5 // pred_region
        // Predicated region
        $region17: #{tpu_custom_call.1} parent=15 // pred_check
          %p145 = pneg %p42
        $region18: #{tpu_custom_call.1} parent=15 // pred_check_branch
          %147 = sbr.rel (%p145) target = $region20
        $region19: #{tpu_custom_call.1} parent=15 // pred_region
          %s148 = sand.u32 %s32, 1
          %s149 = scalar_lea.sflag [#allocation3], %s148
          %s150 = sand.u32 %s32, 1
          %s151 = smul.addr %s150, 48
          %s152 = scalar_lea.vmem [#allocation2], %s151
          %s153 = smul.u32 2, %s22
          %155 = vsyncadd %s149, 0
          %s156 = smul.addr %s153, 3
          %s157 = smul.addr %s156, 8
          %s158 = scalar_lea.hbm %s0, %s157
          %s159 = sshll.u32 %s158, 4
          %s160 = int_to_ptr.hbm [resolvable:$true] %s159
          %s161 = sshll.u32 %s152, 4
          %s162 = int_to_ptr.vmem [resolvable:$true] %s161
          %167 = dma.hbm_to_vmem [thread:$0]  %s160, 768, %s162, %s149, 128, 128, 8
        $region20: #{tpu_custom_call.1} parent=15 // pred_fallthru
          _
        // Predicated region
        $region21: #{tpu_custom_call.1} parent=15 // pred_check
          %p168 = pneg %p68
        $region22: #{tpu_custom_call.1} parent=15 // pred_check_branch
          %170 = sbr.rel (%p168) target = $region24
        $region23: #{tpu_custom_call.1} parent=15 // pred_region
          %s171 = sand.u32 %s58, 1
          %s172 = scalar_lea.sflag [#allocation6], %s171
          %s173 = sand.u32 %s58, 1
          %s174 = smul.addr %s173, 64
          %s175 = scalar_lea.vmem [#allocation5], %s174
          %s176 = smul.u32 2, %s22
          %178 = vsyncadd %s172, 0
          %s179 = smul.addr %s176, 4
          %s180 = smul.addr %s179, 8
          %s181 = scalar_lea.hbm %s1, %s180
          %s182 = sshll.u32 %s181, 4
          %s183 = int_to_ptr.hbm [resolvable:$true] %s182
          %s184 = sshll.u32 %s175, 4
          %s185 = int_to_ptr.vmem [resolvable:$true] %s184
          %190 = dma.hbm_to_vmem [thread:$0]  %s183, 1024, %s185, %s172, 128, 128, 8
        $region24: #{tpu_custom_call.1} parent=15 // pred_fallthru
          _
      $region16: #{tpu_custom_call.1} parent=5 // pred_fallthru
        _
      %p191 = scmp.le.s32.totalorder 1, %s22
      %p192 = scmp.lt.s32.totalorder %s22, 3
      %p193 = pnand %p191, %p192
      %p194 = pneg %p193
      // Predicated region
      $region25: #{tpu_custom_call.1} parent=5 // pred_check
        _
      $region26: #{tpu_custom_call.1} parent=5 // pred_check_branch
        %196 = sbr.rel (%p193) target = $region28
      $region27: #{tpu_custom_call.1} parent=5 // pred_region
        %s197 = ssub.s32 %s22, 1
        %s198 = sand.u32 %s35, 1
        %s199 = scalar_lea.sflag [#allocation3], %s198
        %s200 = sand.u32 %s35, 1
        %s201 = smul.addr %s200, 48
        %s202 = scalar_lea.vmem [#allocation2], %s201
        // Predicated region
        $region29: #{tpu_custom_call.1} parent=27 // pred_check
          %p203 = pneg %p48
        $region30: #{tpu_custom_call.1} parent=27 // pred_check_branch
          %205 = sbr.rel (%p203) target = $region32
        $region31: #{tpu_custom_call.1} parent=27 // pred_region
          %207 = dma.done %s199, 768
        $region32: #{tpu_custom_call.1} parent=27 // pred_fallthru
          _
        %s208 = sand.u32 %s61, 1
        %s209 = scalar_lea.sflag [#allocation6], %s208
        %s210 = sand.u32 %s61, 1
        %s211 = smul.addr %s210, 64
        %s212 = scalar_lea.vmem [#allocation5], %s211
        // Predicated region
        $region33: #{tpu_custom_call.1} parent=27 // pred_check
          %p213 = pneg %p74
        $region34: #{tpu_custom_call.1} parent=27 // pred_check_branch
          %215 = sbr.rel (%p213) target = $region36
        $region35: #{tpu_custom_call.1} parent=27 // pred_region
          %217 = dma.done %s209, 1024
        $region36: #{tpu_custom_call.1} parent=27 // pred_fallthru
          _
        %s218 = sand.u32 %s35, 1
        %s219 = scalar_lea.sflag [#allocation3], %s218
        %s220 = sand.u32 %s35, 1
        %s221 = smul.addr %s220, 48
        %s222 = scalar_lea.vmem [#allocation2], %s221
        %p223 = pneg %p48
        %p224 = pneg %p45
        %s225 = sand.u32 %s61, 1
        %s226 = scalar_lea.sflag [#allocation6], %s225
        %s227 = sand.u32 %s61, 1
        %s228 = smul.addr %s227, 64
        %s229 = scalar_lea.vmem [#allocation5], %s228
        %p230 = pneg %p74
        %p231 = pneg %p71
        %p232 = pneg %p100
        %p233 = pneg %p97
        %s234 = sand.u32 %s87, 1
        %s235 = scalar_lea.sflag [#allocation4], %s234
        %s236 = sand.u32 %s87, 1
        %s237 = smul.addr %s236, 48
        %s238 = scalar_lea.vmem [#allocation7], %s237
        %p239 = pneg %p126
        %p240 = pneg %p123
        %s241 = sand.u32 %s113, 1
        %s242 = scalar_lea.sflag [#allocation9], %s241
        %s243 = sand.u32 %s113, 1
        %s244 = smul.addr %s243, 64
        %s245 = scalar_lea.vmem [#allocation8], %s244
        %s246 = smul.u32 2, %s27
        %s247 = smul.u32 2, %s27
        %s248 = smul.u32 2, %s27
        %s249 = smul.u32 2, %s27
        %v250 = vld [vmem:[%s202] sm:$0xff]
        %v251 = vld [vmem:[%s202 + $0x18] sm:$0xff]
        %s252 = scalar_lea.vmem %s202, 8 [#allocation2]
        %v253 = vld [vmem:[%s252] sm:$0xff]
        %v254 = vld [vmem:[%s252 + $0x18] sm:$0xff]
        %s255 = scalar_lea.vmem %s202, 16 [#allocation2]
        %v256 = vld [vmem:[%s255] sm:$0xff]
        %v257 = vld [vmem:[%s255 + $0x18] sm:$0xff]
        %v260 = vrot.slane %v250, 4
        %v261 = vrot.slane %v251, 4
        %v264 = vsub.f32 %v250, %v260
        %v265 = vsub.f32 %v251, %v261
        %v268 = vrot.slane %v256, 4
        %v269 = vrot.slane %v257, 4
        %v272 = vsub.f32 %v256, %v268
        %v273 = vsub.f32 %v257, %v269
        %v274 = vsub.f32 0.0, %v272
        %v275 = vsub.f32 0.0, %v273
        %v276 = vmul.f32 %v274, %v274
        %v277 = vmul.f32 %v275, %v275
        %v278 = vadd.f32 %v276, 0.0
        %v279 = vadd.f32 %v277, 0.0
        %v280 = vmul.f32 %v264, %v264
        %v281 = vmul.f32 %v265, %v265
        %v282 = vadd.f32 %v278, %v280
        %v283 = vadd.f32 %v279, %v281
        %v284 = vrsqrt.pop %v282
        %v285 = vmul.f32 %v284, %v282
        %v286 = vmul.f32 %v285, %v284
        %v287 = vmul.f32 0.5, %v286
        %v288 = vsub.f32 1.5, %v287
        %v289 = vmul.f32 %v284, %v288
        %vm290 = vweird.f32 %v282
        %vm291 = vweird.f32 %v284
        %vm292 = vmor %vm290, %vm291
        %v293 = vsel %vm292, %v284, %v289
        %v294 = vrsqrt.pop %v283
        %v295 = vmul.f32 %v294, %v283
        %v296 = vmul.f32 %v295, %v294
        %v297 = vmul.f32 0.5, %v296
        %v298 = vsub.f32 1.5, %v297
        %v299 = vmul.f32 %v294, %v298
        %vm300 = vweird.f32 %v283
        %vm301 = vweird.f32 %v294
        %vm302 = vmor %vm300, %vm301
        %v303 = vsel %vm302, %v294, %v299
        %v304 = vmul.f32 %v274, %v293
        %v305 = vmul.f32 %v275, %v303
        %v306 = vmul.f32 %v293, 0.0
        %v307 = vmul.f32 %v303, 0.0
        %v308 = vmul.f32 %v264, %v293
        %v309 = vmul.f32 %v265, %v303
        %v310 = vadd.f32 %v304, 1.0
        %v311 = vadd.f32 %v305, 1.0
        %v312 = vsub.f32 0.0, %v306
        %v313 = vsub.f32 0.0, %v307
        %v314 = vmul.f32 %v310, %v310
        %v315 = vmul.f32 %v311, %v311
        %v316 = vadd.f32 %v314, 0.0
        %v317 = vadd.f32 %v315, 0.0
        %v318 = vmul.f32 %v308, %v308
        %v319 = vmul.f32 %v309, %v309
        %v320 = vadd.f32 %v316, %v318
        %v321 = vadd.f32 %v317, %v319
        %v322 = vmul.f32 %v312, %v312
        %v323 = vmul.f32 %v313, %v313
        %v324 = vadd.f32 %v320, %v322
        %v325 = vadd.f32 %v321, %v323
        %v326 = vrsqrt.pop %v324
        %v327 = vmul.f32 %v326, %v324
        %v328 = vmul.f32 %v327, %v326
        %v329 = vmul.f32 0.5, %v328
        %v330 = vsub.f32 1.5, %v329
        %v331 = vmul.f32 %v326, %v330
        %vm332 = vweird.f32 %v324
        %vm333 = vweird.f32 %v326
        %vm334 = vmor %vm332, %vm333
        %v335 = vsel %vm334, %v326, %v331
        %v336 = vrsqrt.pop %v325
        %v337 = vmul.f32 %v336, %v325
        %v338 = vmul.f32 %v337, %v336
        %v339 = vmul.f32 0.5, %v338
        %v340 = vsub.f32 1.5, %v339
        %v341 = vmul.f32 %v336, %v340
        %vm342 = vweird.f32 %v325
        %vm343 = vweird.f32 %v336
        %vm344 = vmor %vm342, %vm343
        %v345 = vsel %vm344, %v336, %v341
        %v346 = vmul.f32 %v310, %v335
        %v347 = vmul.f32 %v311, %v345
        %v348 = vmul.f32 %v335, 0.0
        %v349 = vmul.f32 %v345, 0.0
        %v350 = vmul.f32 %v308, %v335
        %v351 = vmul.f32 %v309, %v345
        %v352 = vmul.f32 %v312, %v335
        %v353 = vmul.f32 %v313, %v345
        %vm354 = vcmask 122880
        %v355 = vsel %vm354, %v250, 0.0
        %356 = vadd.xlane.f32.xlu0 %v355
        %v357 = vpop.xlane.xlu0 %356
        %v358 = vsel %vm354, %v251, 0.0
        %359 = vadd.xlane.f32.xlu0 %v358
        %v360 = vpop.xlane.xlu0 %359
        %v361 = vrcp.pop 16.0
        %v362 = vmul.f32 16.0, %v361
        %v363 = vsub.f32 1.0, %v362
        %v364 = vmul.f32 %v361, %v363
        %v365 = vadd.f32 %v361, %v364
        %vm366 = vweird.f32 %v361
        %v367 = vsel %vm366, %v361, %v365
        %v368 = vmul.f32 %v357, %v367
        %v369 = vmul.f32 %v360, %v367
        %v370 = vsel %vm354, %v256, 0.0
        %371 = vadd.xlane.f32.xlu0 %v370
        %v372 = vpop.xlane.xlu0 %371
        %v373 = vsel %vm354, %v257, 0.0
        %374 = vadd.xlane.f32.xlu0 %v373
        %v375 = vpop.xlane.xlu0 %374
        %v376 = vmul.f32 %v372, %v367
        %v377 = vmul.f32 %v375, %v367
        %v378 = vperm.slane %v368, 0
        %v379 = vperm.slane %v369, 0
        %v380 = vsub.f32 %v250, %v378
        %v381 = vsub.f32 %v251, %v379
        %v382 = vperm.slane %v376, 0
        %v383 = vperm.slane %v377, 0
        %v384 = vsub.f32 %v256, %v382
        %v385 = vsub.f32 %v257, %v383
        %v386 = vsub.f32 0.0, %v348
        %v387 = vsub.f32 0.0, %v349
        %v388 = vperm.slane %v386, 5
        %v389 = vperm.slane %v387, 5
        %v390 = vmul.f32 %v388, %v380
        %v391 = vmul.f32 %v389, %v381
        %v392 = vperm.slane %v350, 5
        %v393 = vperm.slane %v351, 5
        %v394 = vmul.f32 %v392, %v253
        %v395 = vmul.f32 %v393, %v254
        %v396 = vsub.f32 %v390, %v394
        %v397 = vsub.f32 %v391, %v395
        %v398 = vperm.slane %v352, 5
        %v399 = vperm.slane %v353, 5
        %v400 = vmul.f32 %v398, %v384
        %v401 = vmul.f32 %v399, %v385
        %v402 = vsub.f32 %v396, %v400
        %v403 = vsub.f32 %v397, %v401
        %v404 = vperm.slane %v346, 5
        %v405 = vperm.slane %v347, 5
        %v406 = vmul.f32 %v404, %v380
        %v407 = vmul.f32 %v405, %v381
        %v408 = vmul.f32 %v392, %v384
        %v409 = vmul.f32 %v393, %v385
        %v410 = vadd.f32 %v406, %v408
        %v411 = vadd.f32 %v407, %v409
        %v412 = vmul.f32 %v398, %v253
        %v413 = vmul.f32 %v399, %v254
        %v414 = vsub.f32 %v410, %v412
        %v415 = vsub.f32 %v411, %v413
        %v416 = vmul.f32 %v404, %v253
        %v417 = vmul.f32 %v405, %v254
        %v418 = vperm.slane %v348, 5
        %v419 = vperm.slane %v349, 5
        %v420 = vmul.f32 %v418, %v384
        %v421 = vmul.f32 %v419, %v385
        %v422 = vsub.f32 %v416, %v420
        %v423 = vsub.f32 %v417, %v421
        %v424 = vmul.f32 %v398, %v380
        %v425 = vmul.f32 %v399, %v381
        %v426 = vadd.f32 %v422, %v424
        %v427 = vadd.f32 %v423, %v425
        %v428 = vmul.f32 %v404, %v384
        %v429 = vmul.f32 %v405, %v385
        %v430 = vmul.f32 %v418, %v253
        %v431 = vmul.f32 %v419, %v254
        %v432 = vadd.f32 %v428, %v430
        %v433 = vadd.f32 %v429, %v431
        %v434 = vmul.f32 %v392, %v380
        %v435 = vmul.f32 %v393, %v381
        %v436 = vsub.f32 %v432, %v434
        %v437 = vsub.f32 %v433, %v435
        %v438 = vsub.f32 0.0, %v402
        %v439 = vsub.f32 0.0, %v403
        %v440 = vmul.f32 %v438, %v418
        %v441 = vmul.f32 %v439, %v419
        %v442 = vmul.f32 %v414, %v404
        %v443 = vmul.f32 %v415, %v405
        %v444 = vadd.f32 %v440, %v442
        %v445 = vadd.f32 %v441, %v443
        %v446 = vmul.f32 %v426, %v398
        %v447 = vmul.f32 %v427, %v399
        %v448 = vsub.f32 %v444, %v446
        %v449 = vsub.f32 %v445, %v447
        %v450 = vmul.f32 %v436, %v392
        %v451 = vmul.f32 %v437, %v393
        %v452 = vadd.f32 %v448, %v450
        %v453 = vadd.f32 %v449, %v451
        %vm454 = vcmask 130048
        %455 = vst.msk [vmem:[%s238] sm:$0xff] %vm454, %v452
        %456 = vst.msk [vmem:[%s238 + $0x18] sm:$0xff] %vm454, %v453
        %v457 = vmul.f32 %v438, %v392
        %v458 = vmul.f32 %v439, %v393
        %v459 = vmul.f32 %v414, %v398
        %v460 = vmul.f32 %v415, %v399
        %v461 = vadd.f32 %v457, %v459
        %v462 = vadd.f32 %v458, %v460
        %v463 = vmul.f32 %v426, %v404
        %v464 = vmul.f32 %v427, %v405
        %v465 = vadd.f32 %v461, %v463
        %v466 = vadd.f32 %v462, %v464
        %v467 = vmul.f32 %v436, %v418
        %v468 = vmul.f32 %v437, %v419
        %v469 = vsub.f32 %v465, %v467
        %v470 = vsub.f32 %v466, %v468
        %s471 = scalar_lea.vmem %s238, 8 [#allocation7]
        %472 = vst.msk [vmem:[%s471] sm:$0xff] %vm454, %v469
        %473 = vst.msk [vmem:[%s471 + $0x18] sm:$0xff] %vm454, %v470
        %v474 = vmul.f32 %v438, %v398
        %v475 = vmul.f32 %v439, %v399
        %v476 = vmul.f32 %v414, %v392
        %v477 = vmul.f32 %v415, %v393
        %v478 = vsub.f32 %v474, %v476
        %v479 = vsub.f32 %v475, %v477
        %v480 = vmul.f32 %v426, %v418
        %v481 = vmul.f32 %v427, %v419
        %v482 = vadd.f32 %v478, %v480
        %v483 = vadd.f32 %v479, %v481
        %v484 = vmul.f32 %v436, %v404
        %v485 = vmul.f32 %v437, %v405
        %v486 = vadd.f32 %v482, %v484
        %v487 = vadd.f32 %v483, %v485
        %s488 = scalar_lea.vmem %s238, 16 [#allocation7]
        %489 = vst.msk [vmem:[%s488] sm:$0xff] %vm454, %v486
        %490 = vst.msk [vmem:[%s488 + $0x18] sm:$0xff] %vm454, %v487
        %v491 = vld [vmem:[%s212] sm:$0xff]
        %v492 = vld [vmem:[%s212 + $0x20] sm:$0xff]
        %s493 = scalar_lea.vmem %s212, 8 [#allocation5]
        %v494 = vld [vmem:[%s493] sm:$0xff]
        %v495 = vld [vmem:[%s493 + $0x20] sm:$0xff]
        %s496 = scalar_lea.vmem %s212, 16 [#allocation5]
        %v497 = vld [vmem:[%s496] sm:$0xff]
        %v498 = vld [vmem:[%s496 + $0x20] sm:$0xff]
        %s499 = scalar_lea.vmem %s212, 24 [#allocation5]
        %v500 = vld [vmem:[%s499] sm:$0xff]
        %v501 = vld [vmem:[%s499 + $0x20] sm:$0xff]
        %v502 = vmul.f32 %v404, %v491
        %v503 = vmul.f32 %v405, %v492
        %v504 = vmul.f32 %v418, %v494
        %v505 = vmul.f32 %v419, %v495
        %v506 = vsub.f32 %v502, %v504
        %v507 = vsub.f32 %v503, %v505
        %v508 = vmul.f32 %v392, %v497
        %v509 = vmul.f32 %v393, %v498
        %v510 = vsub.f32 %v506, %v508
        %v511 = vsub.f32 %v507, %v509
        %v512 = vmul.f32 %v398, %v500
        %v513 = vmul.f32 %v399, %v501
        %v514 = vsub.f32 %v510, %v512
        %v515 = vsub.f32 %v511, %v513
        %516 = vst.msk [vmem:[%s245] sm:$0xff] %vm454, %v514
        %517 = vst.msk [vmem:[%s245 + $0x20] sm:$0xff] %vm454, %v515
        %v518 = vmul.f32 %v404, %v494
        %v519 = vmul.f32 %v405, %v495
        %v520 = vmul.f32 %v418, %v491
        %v521 = vmul.f32 %v419, %v492
        %v522 = vadd.f32 %v518, %v520
        %v523 = vadd.f32 %v519, %v521
        %v524 = vmul.f32 %v392, %v500
        %v525 = vmul.f32 %v393, %v501
        %v526 = vadd.f32 %v522, %v524
        %v527 = vadd.f32 %v523, %v525
        %v528 = vmul.f32 %v398, %v497
        %v529 = vmul.f32 %v399, %v498
        %v530 = vsub.f32 %v526, %v528
        %v531 = vsub.f32 %v527, %v529
        %s532 = scalar_lea.vmem %s245, 8 [#allocation8]
        %533 = vst.msk [vmem:[%s532] sm:$0xff] %vm454, %v530
        %534 = vst.msk [vmem:[%s532 + $0x20] sm:$0xff] %vm454, %v531
        %v535 = vmul.f32 %v404, %v497
        %v536 = vmul.f32 %v405, %v498
        %v537 = vmul.f32 %v418, %v500
        %v538 = vmul.f32 %v419, %v501
        %v539 = vsub.f32 %v535, %v537
        %v540 = vsub.f32 %v536, %v538
        %v541 = vmul.f32 %v392, %v491
        %v542 = vmul.f32 %v393, %v492
        %v543 = vadd.f32 %v539, %v541
        %v544 = vadd.f32 %v540, %v542
        %v545 = vmul.f32 %v398, %v494
        %v546 = vmul.f32 %v399, %v495
        %v547 = vadd.f32 %v543, %v545
        %v548 = vadd.f32 %v544, %v546
        %s549 = scalar_lea.vmem %s245, 16 [#allocation8]
        %550 = vst.msk [vmem:[%s549] sm:$0xff] %vm454, %v547
        %551 = vst.msk [vmem:[%s549 + $0x20] sm:$0xff] %vm454, %v548
        %v552 = vmul.f32 %v404, %v500
        %v553 = vmul.f32 %v405, %v501
        %v554 = vmul.f32 %v418, %v497
        %v555 = vmul.f32 %v419, %v498
        %v556 = vadd.f32 %v552, %v554
        %v557 = vadd.f32 %v553, %v555
        %v558 = vmul.f32 %v392, %v494
        %v559 = vmul.f32 %v393, %v495
        %v560 = vsub.f32 %v556, %v558
        %v561 = vsub.f32 %v557, %v559
        %v562 = vmul.f32 %v398, %v491
        %v563 = vmul.f32 %v399, %v492
        %v564 = vadd.f32 %v560, %v562
        %v565 = vadd.f32 %v561, %v563
        %s566 = scalar_lea.vmem %s245, 24 [#allocation8]
        %567 = vst.msk [vmem:[%s566] sm:$0xff] %vm454, %v564
        %568 = vst.msk [vmem:[%s566 + $0x20] sm:$0xff] %vm454, %v565
        %s569 = sand.u32 %s87, 1
        %s570 = scalar_lea.sflag [#allocation4], %s569
        %s571 = sand.u32 %s87, 1
        %s572 = smul.addr %s571, 48
        %s573 = scalar_lea.vmem [#allocation7], %s572
        %s574 = sand.u32 %s113, 1
        %s575 = scalar_lea.sflag [#allocation9], %s574
        %s576 = sand.u32 %s113, 1
        %s577 = smul.addr %s576, 64
        %s578 = scalar_lea.vmem [#allocation8], %s577
        // Predicated region
        $region37: #{tpu_custom_call.1} parent=27 // pred_check
          %p579 = pneg %p97
        $region38: #{tpu_custom_call.1} parent=27 // pred_check_branch
          %581 = sbr.rel (%p579) target = $region40
        $region39: #{tpu_custom_call.1} parent=27 // pred_region
          %s582 = smul.u32 2, %s27
          %584 = vsyncadd %s570, 0
          %s585 = smul.addr %s582, 3
          %s586 = smul.addr %s585, 8
          %s587 = scalar_lea.hbm %s2, %s586
          %s588 = sshll.u32 %s573, 4
          %s589 = int_to_ptr.vmem [resolvable:$true] %s588
          %s590 = sshll.u32 %s587, 4
          %s591 = int_to_ptr.hbm [resolvable:$true] %s590
          %596 = dma.vmem_to_hbm [thread:$0]  %s589, 768, %s591, %s570, 128, 128, 8
        $region40: #{tpu_custom_call.1} parent=27 // pred_fallthru
          _
        // Predicated region
        $region41: #{tpu_custom_call.1} parent=27 // pred_check
          %p597 = pneg %p123
        $region42: #{tpu_custom_call.1} parent=27 // pred_check_branch
          %599 = sbr.rel (%p597) target = $region44
        $region43: #{tpu_custom_call.1} parent=27 // pred_region
          %s600 = smul.u32 2, %s27
          %602 = vsyncadd %s575, 0
          %s603 = smul.addr %s600, 4
          %s604 = smul.addr %s603, 8
          %s605 = scalar_lea.hbm %s3, %s604
          %s606 = sshll.u32 %s578, 4
          %s607 = int_to_ptr.vmem [resolvable:$true] %s606
          %s608 = sshll.u32 %s605, 4
          %s609 = int_to_ptr.hbm [resolvable:$true] %s608
          %614 = dma.vmem_to_hbm [thread:$0]  %s607, 1024, %s609, %s575, 128, 128, 8
        $region44: #{tpu_custom_call.1} parent=27 // pred_fallthru
          _
      $region28: #{tpu_custom_call.1} parent=5 // pred_fallthru
        _
      %p615 = scmp.le.s32.totalorder 2, %s22
      // Predicated region
      $region45: #{tpu_custom_call.1} parent=5 // pred_check
        %p616 = pneg %p615
      $region46: #{tpu_custom_call.1} parent=5 // pred_check_branch
        %618 = sbr.rel (%p616) target = $region48
      $region47: #{tpu_custom_call.1} parent=5 // pred_region
        %s619 = ssub.s32 %s22, 2
        // Predicated region
        $region49: #{tpu_custom_call.1} parent=47 // pred_check
          %p620 = pneg %p103
        $region50: #{tpu_custom_call.1} parent=47 // pred_check_branch
          %622 = sbr.rel (%p620) target = $region52
        $region51: #{tpu_custom_call.1} parent=47 // pred_region
          %s623 = sand.u32 %s88, 1
          %s624 = scalar_lea.sflag [#allocation4], %s623
          %s625 = sand.u32 %s88, 1
          %s626 = smul.addr %s625, 48
          %s627 = scalar_lea.vmem [#allocation7], %s626
          %629 = dma.done %s624, 768
        $region52: #{tpu_custom_call.1} parent=47 // pred_fallthru
          _
        // Predicated region
        $region53: #{tpu_custom_call.1} parent=47 // pred_check
          %p630 = pneg %p129
        $region54: #{tpu_custom_call.1} parent=47 // pred_check_branch
          %632 = sbr.rel (%p630) target = $region56
        $region55: #{tpu_custom_call.1} parent=47 // pred_region
          %s633 = sand.u32 %s114, 1
          %s634 = scalar_lea.sflag [#allocation9], %s633
          %s635 = sand.u32 %s114, 1
          %s636 = smul.addr %s635, 64
          %s637 = scalar_lea.vmem [#allocation8], %s636
          %639 = dma.done %s634, 1024
        $region56: #{tpu_custom_call.1} parent=47 // pred_fallthru
          _
      $region48: #{tpu_custom_call.1} parent=5 // pred_fallthru
        _
    $region6: #{tpu_custom_call.1} parent=1 // loop_footer
      %s26 = sadd.s32 1, %s22
    $region7: #{tpu_custom_call.1} parent=1 // loop_footer_branch
      %21 = sbr.rel target = $region3
    $region8: #{tpu_custom_call.1} parent=1 // loop_exit
      _
    %640 = vsyncpa [#allocation3], 1
    %s641 = scalar_lea.sflag [#allocation3], 1
    %642 = vsyncpa %s641, 1
    %643 = vsyncpa [#allocation6], 1
    %s644 = scalar_lea.sflag [#allocation6], 1
    %645 = vsyncpa %s644, 1
    %646 = vsyncpa [#allocation4], 1
    %s647 = scalar_lea.sflag [#allocation4], 1
    %648 = vsyncpa %s647, 1
    %649 = vsyncpa [#allocation9], 1
    %s650 = scalar_lea.sflag [#allocation9], 1
    %651 = vsyncpa %s650, 1

</llo_original>
